<compile_context>
chip_gen: v5e
topology: v5e:2x2
jax: 0.10.0
libtpu: 0.0.40
codegen_flags: <defaults>
</compile_context>

<pallas_src>
import jax
import jax.numpy as jnp
from jax.experimental import pallas as pl
from jax.experimental.pallas import tpu as pltpu


BN_EPS = 1e-5


def make_fused_gconv_kernel(num_layers, hidden_dim, num_nodes):
    """Build the fused kernel for a fixed (num_layers, hidden_dim, N)."""
    inv_n = 1.0 / float(num_nodes)

    def kernel(*refs):
        # refs = (a_ref, p_ref, x_ref, [w1,b1,w2,b2,gamma,beta] * L, z_cat_ref, g_cat_ref)
        a_ref, p_ref, x_ref = refs[0], refs[1], refs[2]
        layer_refs = [refs[3 + 6 * l: 3 + 6 * (l + 1)] for l in range(num_layers)]
        z_cat_ref = refs[3 + 6 * num_layers]
        g_cat_ref = refs[4 + 6 * num_layers]

        a = a_ref[...]      # A_hat loaded once, resident for all layers
        p = p_ref[...]      # one-hot pooling matrix [G, N]
        z = x_ref[...]

        for l in range(num_layers):
            w1_ref, b1_ref, w2_ref, b2_ref, gamma_ref, beta_ref = layer_refs[l]

            # GIN aggregation (eps = 0): (1 + eps) * x_i + sum_{j in N(i)} x_j == A_hat @ z
            agg = jnp.dot(a, z, preferred_element_type=jnp.float32)

            # MLP: Linear -> ReLU -> Linear
            h = jnp.dot(agg, w1_ref[...], preferred_element_type=jnp.float32) + b1_ref[...]
            h = jnp.maximum(h, 0.0)
            h = jnp.dot(h, w2_ref[...], preferred_element_type=jnp.float32) + b2_ref[...]

            # module-level activation (ReLU)
            h = jnp.maximum(h, 0.0)

            # BatchNorm1d (training mode, biased batch statistics over the node axis),
            # single pass: var = E[x^2] - E[x]^2, normalization via rsqrt on the EUP.
            s = jnp.sum(h, axis=0, keepdims=True)
            sq = jnp.sum(h * h, axis=0, keepdims=True)
            mean = s * inv_n
            var = sq * inv_n - mean * mean
            z = (h - mean) * jax.lax.rsqrt(var + BN_EPS) * gamma_ref[...] + beta_ref[...]

            # Lane-dense slab writes: this layer's block of z_cat and g_cat.
            lo = l * hidden_dim
            z_cat_ref[:, lo:lo + hidden_dim] = z
            # Fused global_add_pool of this layer's output (z still in vregs, no HBM trip).
            g_cat_ref[:, lo:lo + hidden_dim] = jnp.dot(
                p, z, preferred_element_type=jnp.float32)

    return kernel


def gconv_forward(x, edge_index, batch, params, num_graphs):
    n, _ = x.shape
    num_layers = len(params)
    hidden_dim = params[0][2].shape[1]
    d_cat = hidden_dim * num_layers

    # Densify edge_index -> A_hat = A + I  (glue, plain JAX).
    # TODO(synk): for large sparse graphs, feed neighbor lists via scalar prefetch and
    # gather+accumulate in-kernel instead of materializing a dense N x N A_hat.
    src, dst = edge_index[0], edge_index[1]
    a = jnp.zeros((n, n), jnp.float32).at[dst, src].add(1.0)
    a_hat = a + jnp.eye(n, dtype=jnp.float32)

    # One-hot pooling matrix P: [num_graphs, N].
    pool_mat = (batch[None, :] == jnp.arange(num_graphs)[:, None]).astype(jnp.float32)

    flat_params = [p for layer in params for p in layer]
    n_in = 3 + len(flat_params)

    kernel = make_fused_gconv_kernel(num_layers, hidden_dim, n)
    z_cat, g_cat = pl.pallas_call(
        kernel,
        out_shape=(
            jax.ShapeDtypeStruct((n, d_cat), jnp.float32),
            jax.ShapeDtypeStruct((num_graphs, d_cat), jnp.float32),
        ),
        in_specs=[pl.BlockSpec(memory_space=pltpu.MemorySpace.VMEM)] * n_in,
        out_specs=(
            pl.BlockSpec(memory_space=pltpu.MemorySpace.VMEM),
            pl.BlockSpec(memory_space=pltpu.MemorySpace.VMEM),
        ),
        compiler_params=pltpu.CompilerParams(vmem_limit_bytes=32 * 1024 * 1024),
    )(a_hat, pool_mat, x, *flat_params)

    return z_cat, g_cat


def init_params(key, input_dim, hidden_dim, num_layers):
    """Deterministic PyTorch-like (uniform +-1/sqrt(fan_in)) init. Weights are [Din, Dout]."""
    params = []
    for i in range(num_layers):
        d_in = input_dim if i == 0 else hidden_dim
        key, k1, k2, k3, k4 = jax.random.split(key, 5)
        bnd1 = 1.0 / jnp.sqrt(d_in)
        bnd2 = 1.0 / jnp.sqrt(hidden_dim)
        w1 = jax.random.uniform(k1, (d_in, hidden_dim), jnp.float32, -bnd1, bnd1)
        b1 = jax.random.uniform(k2, (1, hidden_dim), jnp.float32, -bnd1, bnd1)
        w2 = jax.random.uniform(k3, (hidden_dim, hidden_dim), jnp.float32, -bnd2, bnd2)
        b2 = jax.random.uniform(k4, (1, hidden_dim), jnp.float32, -bnd2, bnd2)
        gamma = jnp.ones((1, hidden_dim), jnp.float32)   # BatchNorm1d default weight
        beta = jnp.zeros((1, hidden_dim), jnp.float32)   # BatchNorm1d default bias
        params.append((w1, b1, w2, b2, gamma, beta))
    return params


if __name__ == "__main__":
    # Small graph problem: 16 nodes, 8 input features, hidden 32, 3 layers, 2 graphs.
    N, INPUT_DIM, HIDDEN_DIM, NUM_LAYERS, E, NUM_GRAPHS = 16, 8, 32, 3, 40, 2

    key = jax.random.PRNGKey(0)
    key, kx, ke = jax.random.split(key, 3)

    x = jax.random.normal(kx, (N, INPUT_DIM), jnp.float32)
    edge_index = jax.random.randint(ke, (2, E), 0, N, jnp.int32)
    batch = jnp.concatenate([jnp.zeros((N // 2,), jnp.int32),
                             jnp.ones((N - N // 2,), jnp.int32)])

    params = init_params(key, INPUT_DIM, HIDDEN_DIM, NUM_LAYERS)

    z_out, g_out = gconv_forward(x, edge_index, batch, params, NUM_GRAPHS)
    jax.block_until_ready((z_out, g_out))

    assert z_out.shape == (N, HIDDEN_DIM * NUM_LAYERS)
    assert g_out.shape == (NUM_GRAPHS, HIDDEN_DIM * NUM_LAYERS)
    assert bool(jnp.all(jnp.isfinite(z_out))) and bool(jnp.all(jnp.isfinite(g_out)))
    print("KERNEL_OK")
</pallas_src>

<mosaic_0001>
module attributes {stable_mosaic.version = 11 : i64} {
  func.func @kernel(%arg0: memref<16x16xf32, #tpu.memory_space<vmem>>, %arg1: memref<2x16xf32, #tpu.memory_space<vmem>>, %arg2: memref<16x8xf32, #tpu.memory_space<vmem>>, %arg3: memref<8x32xf32, #tpu.memory_space<vmem>>, %arg4: memref<1x32xf32, #tpu.memory_space<vmem>>, %arg5: memref<32x32xf32, #tpu.memory_space<vmem>>, %arg6: memref<1x32xf32, #tpu.memory_space<vmem>>, %arg7: memref<1x32xf32, #tpu.memory_space<vmem>>, %arg8: memref<1x32xf32, #tpu.memory_space<vmem>>, %arg9: memref<32x32xf32, #tpu.memory_space<vmem>>, %arg10: memref<1x32xf32, #tpu.memory_space<vmem>>, %arg11: memref<32x32xf32, #tpu.memory_space<vmem>>, %arg12: memref<1x32xf32, #tpu.memory_space<vmem>>, %arg13: memref<1x32xf32, #tpu.memory_space<vmem>>, %arg14: memref<1x32xf32, #tpu.memory_space<vmem>>, %arg15: memref<32x32xf32, #tpu.memory_space<vmem>>, %arg16: memref<1x32xf32, #tpu.memory_space<vmem>>, %arg17: memref<32x32xf32, #tpu.memory_space<vmem>>, %arg18: memref<1x32xf32, #tpu.memory_space<vmem>>, %arg19: memref<1x32xf32, #tpu.memory_space<vmem>>, %arg20: memref<1x32xf32, #tpu.memory_space<vmem>>, %arg21: memref<16x96xf32, #tpu.memory_space<vmem>>, %arg22: memref<2x96xf32, #tpu.memory_space<vmem>>) attributes {dimension_semantics = [], scalar_prefetch = 0 : i64, scratch_operands = 0 : i64, tpu.core_type = #tpu.core_type<tc>} {
    %c0 = arith.constant 0 : index
    %c0_0 = arith.constant 0 : index
    %0 = vector.load %arg0[%c0, %c0_0] : memref<16x16xf32, #tpu.memory_space<vmem>>, vector<16x16xf32>
    %c0_1 = arith.constant 0 : index
    %c0_2 = arith.constant 0 : index
    %1 = vector.load %arg1[%c0_1, %c0_2] : memref<2x16xf32, #tpu.memory_space<vmem>>, vector<2x16xf32>
    %c0_3 = arith.constant 0 : index
    %c0_4 = arith.constant 0 : index
    %2 = vector.load %arg2[%c0_3, %c0_4] : memref<16x8xf32, #tpu.memory_space<vmem>>, vector<16x8xf32>
    %cst = arith.constant dense<0.000000e+00> : vector<16x8xf32>
    %3 = tpu.matmul %0, %2, %cst {dimension_numbers = #tpu.dot_dimension_numbers<[1], [0], [0], [1], [0, 0, 1, 1], [], []>} : vector<16x16xf32>, vector<16x8xf32>, vector<16x8xf32> -> vector<16x8xf32>
    %c0_5 = arith.constant 0 : index
    %c0_6 = arith.constant 0 : index
    %4 = vector.load %arg3[%c0_5, %c0_6] : memref<8x32xf32, #tpu.memory_space<vmem>>, vector<8x32xf32>
    %cst_7 = arith.constant dense<0.000000e+00> : vector<16x32xf32>
    %5 = tpu.matmul %3, %4, %cst_7 {dimension_numbers = #tpu.dot_dimension_numbers<[1], [0], [0], [1], [0, 0, 1, 1], [], []>} : vector<16x8xf32>, vector<8x32xf32>, vector<16x32xf32> -> vector<16x32xf32>
    %c0_8 = arith.constant 0 : index
    %c0_9 = arith.constant 0 : index
    %6 = vector.load %arg4[%c0_8, %c0_9] : memref<1x32xf32, #tpu.memory_space<vmem>>, vector<1x32xf32>
    %7 = vector.broadcast %6 : vector<1x32xf32> to vector<16x32xf32>
    %8 = arith.addf %5, %7 : vector<16x32xf32>
    %cst_10 = arith.constant 0.000000e+00 : f32
    %9 = vector.broadcast %cst_10 : f32 to vector<16x32xf32>
    %10 = arith.maximumf %8, %9 : vector<16x32xf32>
    %c0_11 = arith.constant 0 : index
    %c0_12 = arith.constant 0 : index
    %11 = vector.load %arg5[%c0_11, %c0_12] : memref<32x32xf32, #tpu.memory_space<vmem>>, vector<32x32xf32>
    %cst_13 = arith.constant dense<0.000000e+00> : vector<16x32xf32>
    %12 = tpu.matmul %10, %11, %cst_13 {dimension_numbers = #tpu.dot_dimension_numbers<[1], [0], [0], [1], [0, 0, 1, 1], [], []>} : vector<16x32xf32>, vector<32x32xf32>, vector<16x32xf32> -> vector<16x32xf32>
    %c0_14 = arith.constant 0 : index
    %c0_15 = arith.constant 0 : index
    %13 = vector.load %arg6[%c0_14, %c0_15] : memref<1x32xf32, #tpu.memory_space<vmem>>, vector<1x32xf32>
    %14 = vector.broadcast %13 : vector<1x32xf32> to vector<16x32xf32>
    %15 = arith.addf %12, %14 : vector<16x32xf32>
    %cst_16 = arith.constant 0.000000e+00 : f32
    %16 = vector.broadcast %cst_16 : f32 to vector<16x32xf32>
    %17 = arith.maximumf %15, %16 : vector<16x32xf32>
    %cst_17 = arith.constant dense<0.000000e+00> : vector<32xf32>
    %18 = vector.multi_reduction <add>, %17, %cst_17 [0] : vector<16x32xf32> to vector<32xf32>
    %19 = vector.shape_cast %18 : vector<32xf32> to vector<1x32xf32>
    %20 = arith.mulf %17, %17 : vector<16x32xf32>
    %cst_18 = arith.constant dense<0.000000e+00> : vector<32xf32>
    %21 = vector.multi_reduction <add>, %20, %cst_18 [0] : vector<16x32xf32> to vector<32xf32>
    %22 = vector.shape_cast %21 : vector<32xf32> to vector<1x32xf32>
    %cst_19 = arith.constant 6.250000e-02 : f32
    %23 = vector.broadcast %cst_19 : f32 to vector<1x32xf32>
    %24 = arith.mulf %19, %23 : vector<1x32xf32>
    %cst_20 = arith.constant 6.250000e-02 : f32
    %25 = vector.broadcast %cst_20 : f32 to vector<1x32xf32>
    %26 = arith.mulf %22, %25 : vector<1x32xf32>
    %27 = arith.mulf %24, %24 : vector<1x32xf32>
    %28 = arith.subf %26, %27 : vector<1x32xf32>
    %29 = vector.broadcast %24 : vector<1x32xf32> to vector<16x32xf32>
    %30 = arith.subf %17, %29 : vector<16x32xf32>
    %cst_21 = arith.constant 9.99999974E-6 : f32
    %31 = vector.broadcast %cst_21 : f32 to vector<1x32xf32>
    %32 = arith.addf %28, %31 : vector<1x32xf32>
    %33 = math.rsqrt %32 : vector<1x32xf32>
    %34 = vector.broadcast %33 : vector<1x32xf32> to vector<16x32xf32>
    %35 = arith.mulf %30, %34 : vector<16x32xf32>
    %c0_22 = arith.constant 0 : index
    %c0_23 = arith.constant 0 : index
    %36 = vector.load %arg7[%c0_22, %c0_23] : memref<1x32xf32, #tpu.memory_space<vmem>>, vector<1x32xf32>
    %37 = vector.broadcast %36 : vector<1x32xf32> to vector<16x32xf32>
    %38 = arith.mulf %35, %37 : vector<16x32xf32>
    %c0_24 = arith.constant 0 : index
    %c0_25 = arith.constant 0 : index
    %39 = vector.load %arg8[%c0_24, %c0_25] : memref<1x32xf32, #tpu.memory_space<vmem>>, vector<1x32xf32>
    %40 = vector.broadcast %39 : vector<1x32xf32> to vector<16x32xf32>
    %41 = arith.addf %38, %40 : vector<16x32xf32>
    %c0_26 = arith.constant 0 : index
    %c0_27 = arith.constant 0 : index
    %42 = vector.load %arg21[%c0_26, %c0_27] : memref<16x96xf32, #tpu.memory_space<vmem>>, vector<16x32xf32>
    tpu.vector_store %arg21[%c0_26, %c0_27], %41 {strides = array<i32>} : memref<16x96xf32, #tpu.memory_space<vmem>>, vector<16x32xf32>,
    %cst_28 = arith.constant dense<0.000000e+00> : vector<2x32xf32>
    %43 = tpu.matmul %1, %41, %cst_28 {dimension_numbers = #tpu.dot_dimension_numbers<[1], [0], [0], [1], [0, 0, 1, 1], [], []>} : vector<2x16xf32>, vector<16x32xf32>, vector<2x32xf32> -> vector<2x32xf32>
    %c0_29 = arith.constant 0 : index
    %c0_30 = arith.constant 0 : index
    %44 = vector.load %arg22[%c0_29, %c0_30] : memref<2x96xf32, #tpu.memory_space<vmem>>, vector<2x32xf32>
    tpu.vector_store %arg22[%c0_29, %c0_30], %43 {strides = array<i32>} : memref<2x96xf32, #tpu.memory_space<vmem>>, vector<2x32xf32>,
    %cst_31 = arith.constant dense<0.000000e+00> : vector<16x32xf32>
    %45 = tpu.matmul %0, %41, %cst_31 {dimension_numbers = #tpu.dot_dimension_numbers<[1], [0], [0], [1], [0, 0, 1, 1], [], []>} : vector<16x16xf32>, vector<16x32xf32>, vector<16x32xf32> -> vector<16x32xf32>
    %c0_32 = arith.constant 0 : index
    %c0_33 = arith.constant 0 : index
    %46 = vector.load %arg9[%c0_32, %c0_33] : memref<32x32xf32, #tpu.memory_space<vmem>>, vector<32x32xf32>
    %cst_34 = arith.constant dense<0.000000e+00> : vector<16x32xf32>
    %47 = tpu.matmul %45, %46, %cst_34 {dimension_numbers = #tpu.dot_dimension_numbers<[1], [0], [0], [1], [0, 0, 1, 1], [], []>} : vector<16x32xf32>, vector<32x32xf32>, vector<16x32xf32> -> vector<16x32xf32>
    %c0_35 = arith.constant 0 : index
    %c0_36 = arith.constant 0 : index
    %48 = vector.load %arg10[%c0_35, %c0_36] : memref<1x32xf32, #tpu.memory_space<vmem>>, vector<1x32xf32>
    %49 = vector.broadcast %48 : vector<1x32xf32> to vector<16x32xf32>
    %50 = arith.addf %47, %49 : vector<16x32xf32>
    %cst_37 = arith.constant 0.000000e+00 : f32
    %51 = vector.broadcast %cst_37 : f32 to vector<16x32xf32>
    %52 = arith.maximumf %50, %51 : vector<16x32xf32>
    %c0_38 = arith.constant 0 : index
    %c0_39 = arith.constant 0 : index
    %53 = vector.load %arg11[%c0_38, %c0_39] : memref<32x32xf32, #tpu.memory_space<vmem>>, vector<32x32xf32>
    %cst_40 = arith.constant dense<0.000000e+00> : vector<16x32xf32>
    %54 = tpu.matmul %52, %53, %cst_40 {dimension_numbers = #tpu.dot_dimension_numbers<[1], [0], [0], [1], [0, 0, 1, 1], [], []>} : vector<16x32xf32>, vector<32x32xf32>, vector<16x32xf32> -> vector<16x32xf32>
    %c0_41 = arith.constant 0 : index
    %c0_42 = arith.constant 0 : index
    %55 = vector.load %arg12[%c0_41, %c0_42] : memref<1x32xf32, #tpu.memory_space<vmem>>, vector<1x32xf32>
    %56 = vector.broadcast %55 : vector<1x32xf32> to vector<16x32xf32>
    %57 = arith.addf %54, %56 : vector<16x32xf32>
    %cst_43 = arith.constant 0.000000e+00 : f32
    %58 = vector.broadcast %cst_43 : f32 to vector<16x32xf32>
    %59 = arith.maximumf %57, %58 : vector<16x32xf32>
    %cst_44 = arith.constant dense<0.000000e+00> : vector<32xf32>
    %60 = vector.multi_reduction <add>, %59, %cst_44 [0] : vector<16x32xf32> to vector<32xf32>
    %61 = vector.shape_cast %60 : vector<32xf32> to vector<1x32xf32>
    %62 = arith.mulf %59, %59 : vector<16x32xf32>
    %cst_45 = arith.constant dense<0.000000e+00> : vector<32xf32>
    %63 = vector.multi_reduction <add>, %62, %cst_45 [0] : vector<16x32xf32> to vector<32xf32>
    %64 = vector.shape_cast %63 : vector<32xf32> to vector<1x32xf32>
    %cst_46 = arith.constant 6.250000e-02 : f32
    %65 = vector.broadcast %cst_46 : f32 to vector<1x32xf32>
    %66 = arith.mulf %61, %65 : vector<1x32xf32>
    %cst_47 = arith.constant 6.250000e-02 : f32
    %67 = vector.broadcast %cst_47 : f32 to vector<1x32xf32>
    %68 = arith.mulf %64, %67 : vector<1x32xf32>
    %69 = arith.mulf %66, %66 : vector<1x32xf32>
    %70 = arith.subf %68, %69 : vector<1x32xf32>
    %71 = vector.broadcast %66 : vector<1x32xf32> to vector<16x32xf32>
    %72 = arith.subf %59, %71 : vector<16x32xf32>
    %cst_48 = arith.constant 9.99999974E-6 : f32
    %73 = vector.broadcast %cst_48 : f32 to vector<1x32xf32>
    %74 = arith.addf %70, %73 : vector<1x32xf32>
    %75 = math.rsqrt %74 : vector<1x32xf32>
    %76 = vector.broadcast %75 : vector<1x32xf32> to vector<16x32xf32>
    %77 = arith.mulf %72, %76 : vector<16x32xf32>
    %c0_49 = arith.constant 0 : index
    %c0_50 = arith.constant 0 : index
    %78 = vector.load %arg13[%c0_49, %c0_50] : memref<1x32xf32, #tpu.memory_space<vmem>>, vector<1x32xf32>
    %79 = vector.broadcast %78 : vector<1x32xf32> to vector<16x32xf32>
    %80 = arith.mulf %77, %79 : vector<16x32xf32>
    %c0_51 = arith.constant 0 : index
    %c0_52 = arith.constant 0 : index
    %81 = vector.load %arg14[%c0_51, %c0_52] : memref<1x32xf32, #tpu.memory_space<vmem>>, vector<1x32xf32>
    %82 = vector.broadcast %81 : vector<1x32xf32> to vector<16x32xf32>
    %83 = arith.addf %80, %82 : vector<16x32xf32>
    %c0_53 = arith.constant 0 : index
    %c32 = arith.constant 32 : index
    %84 = vector.load %arg21[%c0_53, %c32] : memref<16x96xf32, #tpu.memory_space<vmem>>, vector<16x32xf32>
    tpu.vector_store %arg21[%c0_53, %c32], %83 {strides = array<i32>} : memref<16x96xf32, #tpu.memory_space<vmem>>, vector<16x32xf32>,
    %cst_54 = arith.constant dense<0.000000e+00> : vector<2x32xf32>
    %85 = tpu.matmul %1, %83, %cst_54 {dimension_numbers = #tpu.dot_dimension_numbers<[1], [0], [0], [1], [0, 0, 1, 1], [], []>} : vector<2x16xf32>, vector<16x32xf32>, vector<2x32xf32> -> vector<2x32xf32>
    %c0_55 = arith.constant 0 : index
    %c32_56 = arith.constant 32 : index
    %86 = vector.load %arg22[%c0_55, %c32_56] : memref<2x96xf32, #tpu.memory_space<vmem>>, vector<2x32xf32>
    tpu.vector_store %arg22[%c0_55, %c32_56], %85 {strides = array<i32>} : memref<2x96xf32, #tpu.memory_space<vmem>>, vector<2x32xf32>,
    %cst_57 = arith.constant dense<0.000000e+00> : vector<16x32xf32>
    %87 = tpu.matmul %0, %83, %cst_57 {dimension_numbers = #tpu.dot_dimension_numbers<[1], [0], [0], [1], [0, 0, 1, 1], [], []>} : vector<16x16xf32>, vector<16x32xf32>, vector<16x32xf32> -> vector<16x32xf32>
    %c0_58 = arith.constant 0 : index
    %c0_59 = arith.constant 0 : index
    %88 = vector.load %arg15[%c0_58, %c0_59] : memref<32x32xf32, #tpu.memory_space<vmem>>, vector<32x32xf32>
    %cst_60 = arith.constant dense<0.000000e+00> : vector<16x32xf32>
    %89 = tpu.matmul %87, %88, %cst_60 {dimension_numbers = #tpu.dot_dimension_numbers<[1], [0], [0], [1], [0, 0, 1, 1], [], []>} : vector<16x32xf32>, vector<32x32xf32>, vector<16x32xf32> -> vector<16x32xf32>
    %c0_61 = arith.constant 0 : index
    %c0_62 = arith.constant 0 : index
    %90 = vector.load %arg16[%c0_61, %c0_62] : memref<1x32xf32, #tpu.memory_space<vmem>>, vector<1x32xf32>
    %91 = vector.broadcast %90 : vector<1x32xf32> to vector<16x32xf32>
    %92 = arith.addf %89, %91 : vector<16x32xf32>
    %cst_63 = arith.constant 0.000000e+00 : f32
    %93 = vector.broadcast %cst_63 : f32 to vector<16x32xf32>
    %94 = arith.maximumf %92, %93 : vector<16x32xf32>
    %c0_64 = arith.constant 0 : index
    %c0_65 = arith.constant 0 : index
    %95 = vector.load %arg17[%c0_64, %c0_65] : memref<32x32xf32, #tpu.memory_space<vmem>>, vector<32x32xf32>
    %cst_66 = arith.constant dense<0.000000e+00> : vector<16x32xf32>
    %96 = tpu.matmul %94, %95, %cst_66 {dimension_numbers = #tpu.dot_dimension_numbers<[1], [0], [0], [1], [0, 0, 1, 1], [], []>} : vector<16x32xf32>, vector<32x32xf32>, vector<16x32xf32> -> vector<16x32xf32>
    %c0_67 = arith.constant 0 : index
    %c0_68 = arith.constant 0 : index
    %97 = vector.load %arg18[%c0_67, %c0_68] : memref<1x32xf32, #tpu.memory_space<vmem>>, vector<1x32xf32>
    %98 = vector.broadcast %97 : vector<1x32xf32> to vector<16x32xf32>
    %99 = arith.addf %96, %98 : vector<16x32xf32>
    %cst_69 = arith.constant 0.000000e+00 : f32
    %100 = vector.broadcast %cst_69 : f32 to vector<16x32xf32>
    %101 = arith.maximumf %99, %100 : vector<16x32xf32>
    %cst_70 = arith.constant dense<0.000000e+00> : vector<32xf32>
    %102 = vector.multi_reduction <add>, %101, %cst_70 [0] : vector<16x32xf32> to vector<32xf32>
    %103 = vector.shape_cast %102 : vector<32xf32> to vector<1x32xf32>
    %104 = arith.mulf %101, %101 : vector<16x32xf32>
    %cst_71 = arith.constant dense<0.000000e+00> : vector<32xf32>
    %105 = vector.multi_reduction <add>, %104, %cst_71 [0] : vector<16x32xf32> to vector<32xf32>
    %106 = vector.shape_cast %105 : vector<32xf32> to vector<1x32xf32>
    %cst_72 = arith.constant 6.250000e-02 : f32
    %107 = vector.broadcast %cst_72 : f32 to vector<1x32xf32>
    %108 = arith.mulf %103, %107 : vector<1x32xf32>
    %cst_73 = arith.constant 6.250000e-02 : f32
    %109 = vector.broadcast %cst_73 : f32 to vector<1x32xf32>
    %110 = arith.mulf %106, %109 : vector<1x32xf32>
    %111 = arith.mulf %108, %108 : vector<1x32xf32>
    %112 = arith.subf %110, %111 : vector<1x32xf32>
    %113 = vector.broadcast %108 : vector<1x32xf32> to vector<16x32xf32>
    %114 = arith.subf %101, %113 : vector<16x32xf32>
    %cst_74 = arith.constant 9.99999974E-6 : f32
    %115 = vector.broadcast %cst_74 : f32 to vector<1x32xf32>
    %116 = arith.addf %112, %115 : vector<1x32xf32>
    %117 = math.rsqrt %116 : vector<1x32xf32>
    %118 = vector.broadcast %117 : vector<1x32xf32> to vector<16x32xf32>
    %119 = arith.mulf %114, %118 : vector<16x32xf32>
    %c0_75 = arith.constant 0 : index
    %c0_76 = arith.constant 0 : index
    %120 = vector.load %arg19[%c0_75, %c0_76] : memref<1x32xf32, #tpu.memory_space<vmem>>, vector<1x32xf32>
    %121 = vector.broadcast %120 : vector<1x32xf32> to vector<16x32xf32>
    %122 = arith.mulf %119, %121 : vector<16x32xf32>
    %c0_77 = arith.constant 0 : index
    %c0_78 = arith.constant 0 : index
    %123 = vector.load %arg20[%c0_77, %c0_78] : memref<1x32xf32, #tpu.memory_space<vmem>>, vector<1x32xf32>
    %124 = vector.broadcast %123 : vector<1x32xf32> to vector<16x32xf32>
    %125 = arith.addf %122, %124 : vector<16x32xf32>
    %c0_79 = arith.constant 0 : index
    %c64 = arith.constant 64 : index
    %126 = vector.load %arg21[%c0_79, %c64] : memref<16x96xf32, #tpu.memory_space<vmem>>, vector<16x32xf32>
    tpu.vector_store %arg21[%c0_79, %c64], %125 {strides = array<i32>} : memref<16x96xf32, #tpu.memory_space<vmem>>, vector<16x32xf32>,
    %cst_80 = arith.constant dense<0.000000e+00> : vector<2x32xf32>
    %127 = tpu.matmul %1, %125, %cst_80 {dimension_numbers = #tpu.dot_dimension_numbers<[1], [0], [0], [1], [0, 0, 1, 1], [], []>} : vector<2x16xf32>, vector<16x32xf32>, vector<2x32xf32> -> vector<2x32xf32>
    %c0_81 = arith.constant 0 : index
    %c64_82 = arith.constant 64 : index
    %128 = vector.load %arg22[%c0_81, %c64_82] : memref<2x96xf32, #tpu.memory_space<vmem>>, vector<2x32xf32>
    tpu.vector_store %arg22[%c0_81, %c64_82], %127 {strides = array<i32>} : memref<2x96xf32, #tpu.memory_space<vmem>>, vector<2x32xf32>,
    return
  }
}

</mosaic_0001>

<llo_original>
// kernel: tpu_custom_call.1
$region0: #{tpu_custom_call.1}
  #allocation0 [shape = 'u32[]', space=smem, size = 0x4, offset = 0x4, fixed_abs, tag = 'smem constant byte address 0x4 - core index']
  #allocation1 [shape = 'u32[72,128]{1,0:T(1,128)}', space=vmem, size = 0x9000, scoped, tag = 'internal scratch']
  %s0 = inlined_call_operand.hbm [shape: f32[16,16], index: 0, kind: input, shape index: {}]
  %s1 = inlined_call_operand.hbm [shape: f32[2,16], index: 1, kind: input, shape index: {}]
  %s2 = inlined_call_operand.vmem [shape: f32[16,8], index: 2, kind: input, shape index: {}]
  %s3 = inlined_call_operand.hbm [shape: f32[8,32], index: 3, kind: input, shape index: {}]
  %s4 = inlined_call_operand.hbm [shape: f32[1,32], index: 4, kind: input, shape index: {}]
  %s5 = inlined_call_operand.hbm [shape: f32[32,32], index: 5, kind: input, shape index: {}]
  %s6 = inlined_call_operand.hbm [shape: f32[1,32], index: 6, kind: input, shape index: {}]
  %s7 = inlined_call_operand.hbm [shape: f32[1,32], index: 7, kind: input, shape index: {}]
  %s8 = inlined_call_operand.hbm [shape: f32[1,32], index: 8, kind: input, shape index: {}]
  %s9 = inlined_call_operand.vmem [shape: f32[32,32], index: 9, kind: input, shape index: {}]
  %s10 = inlined_call_operand.vmem [shape: f32[1,32], index: 10, kind: input, shape index: {}]
  %s11 = inlined_call_operand.hbm [shape: f32[32,32], index: 11, kind: input, shape index: {}]
  %s12 = inlined_call_operand.vmem [shape: f32[1,32], index: 12, kind: input, shape index: {}]
  %s13 = inlined_call_operand.vmem [shape: f32[1,32], index: 13, kind: input, shape index: {}]
  %s14 = inlined_call_operand.vmem [shape: f32[1,32], index: 14, kind: input, shape index: {}]
  %s15 = inlined_call_operand.hbm [shape: f32[32,32], index: 15, kind: input, shape index: {}]
  %s16 = inlined_call_operand.vmem [shape: f32[1,32], index: 16, kind: input, shape index: {}]
  %s17 = inlined_call_operand.hbm [shape: f32[32,32], index: 17, kind: input, shape index: {}]
  %s18 = inlined_call_operand.vmem [shape: f32[1,32], index: 18, kind: input, shape index: {}]
  %s19 = inlined_call_operand.vmem [shape: f32[1,32], index: 19, kind: input, shape index: {}]
  %s20 = inlined_call_operand.vmem [shape: f32[1,32], index: 20, kind: input, shape index: {}]
  %s21 = inlined_call_operand.hbm [shape: f32[16,96], index: 21, kind: output, shape index: {0}]
  %s22 = inlined_call_operand.hbm [shape: f32[2,96], index: 22, kind: output, shape index: {1}]
  %23 = xla_tuple %s21, %s22
  %s24 = sld [smem:[#allocation0]]
  $region146: #{tpu_custom_call.1} parent=0
    _
  %s26 = ssub.s32 1, %s24
  %s27 = scalar_select 0, %s26, %s24
  $region1: #{tpu_custom_call.1} parent=0
    #allocation2 [shape = 'u8[8192]{0}', space=vmem, size = 0x2000, scoped, tag = 'input window, operand 0, single buffered']
    #allocation3 [shape = 's32[1]{0}', space=sflag, size = 0x4, scoped, tag = 'scoped memory for tpu_custom_call.1']
    #allocation4 [shape = 's32[1]{0}', space=sflag, size = 0x4, scoped, tag = 'scoped memory for tpu_custom_call.1']
    #allocation5 [shape = 'u8[1024]{0}', space=vmem, size = 0x400, scoped, tag = 'input window, operand 1, single buffered']
    #allocation6 [shape = 's32[1]{0}', space=sflag, size = 0x4, scoped, tag = 'scoped memory for tpu_custom_call.1']
    #allocation7 [shape = 'u8[4096]{0}', space=vmem, size = 0x1000, scoped, tag = 'input window, operand 3, single buffered']
    #allocation8 [shape = 'u8[512]{0}', space=vmem, size = 0x400, scoped, tag = 'input window, operand 4, single buffered']
    #allocation9 [shape = 's32[1]{0}', space=sflag, size = 0x4, scoped, tag = 'scoped memory for tpu_custom_call.1']
    #allocation10 [shape = 'u8[16384]{0}', space=vmem, size = 0x4000, scoped, tag = 'input window, operand 5, single buffered']
    #allocation11 [shape = 'u8[512]{0}', space=vmem, size = 0x400, scoped, tag = 'input window, operand 6, single buffered']
    #allocation12 [shape = 's32[1]{0}', space=sflag, size = 0x4, scoped, tag = 'scoped memory for tpu_custom_call.1']
    #allocation13 [shape = 'u8[512]{0}', space=vmem, size = 0x400, scoped, tag = 'input window, operand 7, single buffered']
    #allocation14 [shape = 'u8[512]{0}', space=vmem, size = 0x400, scoped, tag = 'input window, operand 8, single buffered']
    #allocation15 [shape = 's32[1]{0}', space=sflag, size = 0x4, scoped, tag = 'scoped memory for tpu_custom_call.1']
    #allocation16 [shape = 'u8[16384]{0}', space=vmem, size = 0x4000, scoped, tag = 'input window, operand 11, single buffered']
    #allocation17 [shape = 'u8[16384]{0}', space=vmem, size = 0x4000, scoped, tag = 'input window, operand 15, single buffered']
    #allocation18 [shape = 's32[1]{0}', space=sflag, size = 0x4, scoped, tag = 'scoped memory for tpu_custom_call.1']
    #allocation19 [shape = 'u8[16384]{0}', space=vmem, size = 0x4000, scoped, tag = 'input window, operand 17, single buffered']
    #allocation20 [shape = 'u8[8192]{0}', space=vmem, size = 0x2000, scoped, tag = 'output window, operand 0, single buffered']
    #allocation21 [shape = 'u8[1024]{0}', space=vmem, size = 0x400, scoped, tag = 'output window, operand 1, single buffered']
    #allocation22 [shape = 's32[1]{0}', space=sflag, size = 0x4, scoped, tag = 'scoped memory for tpu_custom_call.1']
    %28 = vsyncpa [#allocation3], 0
    %29 = vsyncpa [#allocation6], 0
    %30 = vsyncpa [#allocation9], 0
    %31 = vsyncpa [#allocation12], 0
    %32 = vsyncpa [#allocation15], 0
    %33 = vsyncpa [#allocation18], 0
    %34 = vsyncpa [#allocation4], 0
    %35 = vsyncpa [#allocation22], 0
    // Predicated region
    $region2: #{tpu_custom_call.1} parent=1 // pred_check
      _
    $region3: #{tpu_custom_call.1} parent=1 // pred_check_branch
      %37 = sbr.rel (0) target = $region5
    $region4: #{tpu_custom_call.1} parent=1 // pred_region
      %39 = vsyncadd [#allocation3], 0
      %s40 = sshll.u32 %s0, 4
      %s41 = int_to_ptr.hbm [resolvable:$true] %s40
      %s42 = sshll.u32 [#allocation2], 4
      %s43 = int_to_ptr.vmem [resolvable:$true] %s42
      %48 = dma.hbm_to_vmem [thread:$0]  %s41, 256, %s43, [#allocation3], 128, 128, 8
    $region5: #{tpu_custom_call.1} parent=1 // pred_fallthru
      _
    // Predicated region
    $region6: #{tpu_custom_call.1} parent=1 // pred_check
      _
    $region7: #{tpu_custom_call.1} parent=1 // pred_check_branch
      %50 = sbr.rel (0) target = $region9
    $region8: #{tpu_custom_call.1} parent=1 // pred_region
      %52 = vsyncadd [#allocation6], 0
      %s54 = sshll.u32 %s1, 4
      %s55 = int_to_ptr.hbm [resolvable:$true] %s54
      %s56 = sshll.u32 [#allocation5], 4
      %s57 = int_to_ptr.vmem [resolvable:$true] %s56
      %59 = dma.hbm_to_vmem [thread:$0]  %s55, 32, %s57, [#allocation6]
    $region9: #{tpu_custom_call.1} parent=1 // pred_fallthru
      _
    // Predicated region
    $region10: #{tpu_custom_call.1} parent=1 // pred_check
      _
    $region11: #{tpu_custom_call.1} parent=1 // pred_check_branch
      %61 = sbr.rel (0) target = $region13
    $region12: #{tpu_custom_call.1} parent=1 // pred_region
      _
    $region13: #{tpu_custom_call.1} parent=1 // pred_fallthru
      _
    // Predicated region
    $region14: #{tpu_custom_call.1} parent=1 // pred_check
      _
    $region15: #{tpu_custom_call.1} parent=1 // pred_check_branch
      %63 = sbr.rel (0) target = $region17
    $region16: #{tpu_custom_call.1} parent=1 // pred_region
      %65 = vsyncadd [#allocation6], 0
      %s67 = sshll.u32 %s3, 4
      %s68 = int_to_ptr.hbm [resolvable:$true] %s67
      %s69 = sshll.u32 [#allocation7], 4
      %s70 = int_to_ptr.vmem [resolvable:$true] %s69
      %72 = dma.hbm_to_vmem [thread:$0]  %s68, 128, %s70, [#allocation6]
    $region17: #{tpu_custom_call.1} parent=1 // pred_fallthru
      _
    // Predicated region
    $region18: #{tpu_custom_call.1} parent=1 // pred_check
      _
    $region19: #{tpu_custom_call.1} parent=1 // pred_check_branch
      %74 = sbr.rel (0) target = $region21
    $region20: #{tpu_custom_call.1} parent=1 // pred_region
      %76 = vsyncadd [#allocation9], 0
      %s78 = sshll.u32 %s4, 4
      %s79 = int_to_ptr.hbm [resolvable:$true] %s78
      %s80 = sshll.u32 [#allocation8], 4
      %s81 = int_to_ptr.vmem [resolvable:$true] %s80
      %83 = dma.hbm_to_vmem [thread:$0]  %s79, 16, %s81, [#allocation9]
    $region21: #{tpu_custom_call.1} parent=1 // pred_fallthru
      _
    // Predicated region
    $region22: #{tpu_custom_call.1} parent=1 // pred_check
      _
    $region23: #{tpu_custom_call.1} parent=1 // pred_check_branch
      %85 = sbr.rel (0) target = $region25
    $region24: #{tpu_custom_call.1} parent=1 // pred_region
      %87 = vsyncadd [#allocation9], 0
      %s88 = sshll.u32 %s5, 4
      %s89 = int_to_ptr.hbm [resolvable:$true] %s88
      %s90 = sshll.u32 [#allocation10], 4
      %s91 = int_to_ptr.vmem [resolvable:$true] %s90
      %96 = dma.hbm_to_vmem [thread:$0]  %s89, 512, %s91, [#allocation9], 128, 128, 8
    $region25: #{tpu_custom_call.1} parent=1 // pred_fallthru
      _
    // Predicated region
    $region26: #{tpu_custom_call.1} parent=1 // pred_check
      _
    $region27: #{tpu_custom_call.1} parent=1 // pred_check_branch
      %98 = sbr.rel (0) target = $region29
    $region28: #{tpu_custom_call.1} parent=1 // pred_region
      %100 = vsyncadd [#allocation12], 0
      %s102 = sshll.u32 %s6, 4
      %s103 = int_to_ptr.hbm [resolvable:$true] %s102
      %s104 = sshll.u32 [#allocation11], 4
      %s105 = int_to_ptr.vmem [resolvable:$true] %s104
      %107 = dma.hbm_to_vmem [thread:$0]  %s103, 16, %s105, [#allocation12]
    $region29: #{tpu_custom_call.1} parent=1 // pred_fallthru
      _
    // Predicated region
    $region30: #{tpu_custom_call.1} parent=1 // pred_check
      _
    $region31: #{tpu_custom_call.1} parent=1 // pred_check_branch
      %109 = sbr.rel (0) target = $region33
    $region32: #{tpu_custom_call.1} parent=1 // pred_region
      %111 = vsyncadd [#allocation12], 0
      %s113 = sshll.u32 %s7, 4
      %s114 = int_to_ptr.hbm [resolvable:$true] %s113
      %s115 = sshll.u32 [#allocation13], 4
      %s116 = int_to_ptr.vmem [resolvable:$true] %s115
      %118 = dma.hbm_to_vmem [thread:$0]  %s114, 16, %s116, [#allocation12]
    $region33: #{tpu_custom_call.1} parent=1 // pred_fallthru
      _
    // Predicated region
    $region34: #{tpu_custom_call.1} parent=1 // pred_check
      _
    $region35: #{tpu_custom_call.1} parent=1 // pred_check_branch
      %120 = sbr.rel (0) target = $region37
    $region36: #{tpu_custom_call.1} parent=1 // pred_region
      %122 = vsyncadd [#allocation15], 0
      %s124 = sshll.u32 %s8, 4
      %s125 = int_to_ptr.hbm [resolvable:$true] %s124
      %s126 = sshll.u32 [#allocation14], 4
      %s127 = int_to_ptr.vmem [resolvable:$true] %s126
      %129 = dma.hbm_to_vmem [thread:$0]  %s125, 16, %s127, [#allocation15]
    $region37: #{tpu_custom_call.1} parent=1 // pred_fallthru
      _
    // Predicated region
    $region38: #{tpu_custom_call.1} parent=1 // pred_check
      _
    $region39: #{tpu_custom_call.1} parent=1 // pred_check_branch
      %131 = sbr.rel (0) target = $region41
    $region40: #{tpu_custom_call.1} parent=1 // pred_region
      _
    $region41: #{tpu_custom_call.1} parent=1 // pred_fallthru
      _
    // Predicated region
    $region42: #{tpu_custom_call.1} parent=1 // pred_check
      _
    $region43: #{tpu_custom_call.1} parent=1 // pred_check_branch
      %133 = sbr.rel (0) target = $region45
    $region44: #{tpu_custom_call.1} parent=1 // pred_region
      _
    $region45: #{tpu_custom_call.1} parent=1 // pred_fallthru
      _
    // Predicated region
    $region46: #{tpu_custom_call.1} parent=1 // pred_check
      _
    $region47: #{tpu_custom_call.1} parent=1 // pred_check_branch
      %135 = sbr.rel (0) target = $region49
    $region48: #{tpu_custom_call.1} parent=1 // pred_region
      %137 = vsyncadd [#allocation15], 0
      %s138 = sshll.u32 %s11, 4
      %s139 = int_to_ptr.hbm [resolvable:$true] %s138
      %s140 = sshll.u32 [#allocation16], 4
      %s141 = int_to_ptr.vmem [resolvable:$true] %s140
      %146 = dma.hbm_to_vmem [thread:$0]  %s139, 512, %s141, [#allocation15], 128, 128, 8
    $region49: #{tpu_custom_call.1} parent=1 // pred_fallthru
      _
    // Predicated region
    $region50: #{tpu_custom_call.1} parent=1 // pred_check
      _
    $region51: #{tpu_custom_call.1} parent=1 // pred_check_branch
      %148 = sbr.rel (0) target = $region53
    $region52: #{tpu_custom_call.1} parent=1 // pred_region
      _
    $region53: #{tpu_custom_call.1} parent=1 // pred_fallthru
      _
    // Predicated region
    $region54: #{tpu_custom_call.1} parent=1 // pred_check
      _
    $region55: #{tpu_custom_call.1} parent=1 // pred_check_branch
      %150 = sbr.rel (0) target = $region57
    $region56: #{tpu_custom_call.1} parent=1 // pred_region
      _
    $region57: #{tpu_custom_call.1} parent=1 // pred_fallthru
      _
    // Predicated region
    $region58: #{tpu_custom_call.1} parent=1 // pred_check
      _
    $region59: #{tpu_custom_call.1} parent=1 // pred_check_branch
      %152 = sbr.rel (0) target = $region61
    $region60: #{tpu_custom_call.1} parent=1 // pred_region
      _
    $region61: #{tpu_custom_call.1} parent=1 // pred_fallthru
      _
    // Predicated region
    $region62: #{tpu_custom_call.1} parent=1 // pred_check
      _
    $region63: #{tpu_custom_call.1} parent=1 // pred_check_branch
      %154 = sbr.rel (0) target = $region65
    $region64: #{tpu_custom_call.1} parent=1 // pred_region
      %156 = vsyncadd [#allocation18], 0
      %s157 = sshll.u32 %s15, 4
      %s158 = int_to_ptr.hbm [resolvable:$true] %s157
      %s159 = sshll.u32 [#allocation17], 4
      %s160 = int_to_ptr.vmem [resolvable:$true] %s159
      %165 = dma.hbm_to_vmem [thread:$0]  %s158, 512, %s160, [#allocation18], 128, 128, 8
    $region65: #{tpu_custom_call.1} parent=1 // pred_fallthru
      _
    // Predicated region
    $region66: #{tpu_custom_call.1} parent=1 // pred_check
      _
    $region67: #{tpu_custom_call.1} parent=1 // pred_check_branch
      %167 = sbr.rel (0) target = $region69
    $region68: #{tpu_custom_call.1} parent=1 // pred_region
      _
    $region69: #{tpu_custom_call.1} parent=1 // pred_fallthru
      _
    // Predicated region
    $region70: #{tpu_custom_call.1} parent=1 // pred_check
      _
    $region71: #{tpu_custom_call.1} parent=1 // pred_check_branch
      %169 = sbr.rel (0) target = $region73
    $region72: #{tpu_custom_call.1} parent=1 // pred_region
      %171 = vsyncadd [#allocation18], 0
      %s172 = sshll.u32 %s17, 4
      %s173 = int_to_ptr.hbm [resolvable:$true] %s172
      %s174 = sshll.u32 [#allocation19], 4
      %s175 = int_to_ptr.vmem [resolvable:$true] %s174
      %180 = dma.hbm_to_vmem [thread:$0]  %s173, 512, %s175, [#allocation18], 128, 128, 8
    $region73: #{tpu_custom_call.1} parent=1 // pred_fallthru
      _
    // Predicated region
    $region74: #{tpu_custom_call.1} parent=1 // pred_check
      _
    $region75: #{tpu_custom_call.1} parent=1 // pred_check_branch
      %182 = sbr.rel (0) target = $region77
    $region76: #{tpu_custom_call.1} parent=1 // pred_region
      _
    $region77: #{tpu_custom_call.1} parent=1 // pred_fallthru
      _
    // Predicated region
    $region78: #{tpu_custom_call.1} parent=1 // pred_check
      _
    $region79: #{tpu_custom_call.1} parent=1 // pred_check_branch
      %184 = sbr.rel (0) target = $region81
    $region80: #{tpu_custom_call.1} parent=1 // pred_region
      _
    $region81: #{tpu_custom_call.1} parent=1 // pred_fallthru
      _
    // Predicated region
    $region82: #{tpu_custom_call.1} parent=1 // pred_check
      _
    $region83: #{tpu_custom_call.1} parent=1 // pred_check_branch
      %186 = sbr.rel (0) target = $region85
    $region84: #{tpu_custom_call.1} parent=1 // pred_region
      _
    $region85: #{tpu_custom_call.1} parent=1 // pred_fallthru
      _
    // Predicated region
    $region86: #{tpu_custom_call.1} parent=1 // pred_check
      _
    $region87: #{tpu_custom_call.1} parent=1 // pred_check_branch
      %188 = sbr.rel (0) target = $region89
    $region88: #{tpu_custom_call.1} parent=1 // pred_region
      %190 = dma.done [#allocation3], 256
    $region89: #{tpu_custom_call.1} parent=1 // pred_fallthru
      _
    // Predicated region
    $region90: #{tpu_custom_call.1} parent=1 // pred_check
      _
    $region91: #{tpu_custom_call.1} parent=1 // pred_check_branch
      %192 = sbr.rel (0) target = $region93
    $region92: #{tpu_custom_call.1} parent=1 // pred_region
      %194 = dma.done [#allocation6], 32
    $region93: #{tpu_custom_call.1} parent=1 // pred_fallthru
      _
    // Predicated region
    $region94: #{tpu_custom_call.1} parent=1 // pred_check
      _
    $region95: #{tpu_custom_call.1} parent=1 // pred_check_branch
      %196 = sbr.rel (0) target = $region97
    $region96: #{tpu_custom_call.1} parent=1 // pred_region
      %198 = dma.done [#allocation6], 128
    $region97: #{tpu_custom_call.1} parent=1 // pred_fallthru
      _
    // Predicated region
    $region98: #{tpu_custom_call.1} parent=1 // pred_check
      _
    $region99: #{tpu_custom_call.1} parent=1 // pred_check_branch
      %200 = sbr.rel (0) target = $region101
    $region100: #{tpu_custom_call.1} parent=1 // pred_region
      %202 = dma.done [#allocation9], 16
    $region101: #{tpu_custom_call.1} parent=1 // pred_fallthru
      _
    // Predicated region
    $region102: #{tpu_custom_call.1} parent=1 // pred_check
      _
    $region103: #{tpu_custom_call.1} parent=1 // pred_check_branch
      %204 = sbr.rel (0) target = $region105
    $region104: #{tpu_custom_call.1} parent=1 // pred_region
      %206 = dma.done [#allocation9], 512
    $region105: #{tpu_custom_call.1} parent=1 // pred_fallthru
      _
    // Predicated region
    $region106: #{tpu_custom_call.1} parent=1 // pred_check
      _
    $region107: #{tpu_custom_call.1} parent=1 // pred_check_branch
      %208 = sbr.rel (0) target = $region109
    $region108: #{tpu_custom_call.1} parent=1 // pred_region
      %210 = dma.done [#allocation12], 16
    $region109: #{tpu_custom_call.1} parent=1 // pred_fallthru
      _
    // Predicated region
    $region110: #{tpu_custom_call.1} parent=1 // pred_check
      _
    $region111: #{tpu_custom_call.1} parent=1 // pred_check_branch
      %212 = sbr.rel (0) target = $region113
    $region112: #{tpu_custom_call.1} parent=1 // pred_region
      %214 = dma.done [#allocation12], 16
    $region113: #{tpu_custom_call.1} parent=1 // pred_fallthru
      _
    // Predicated region
    $region114: #{tpu_custom_call.1} parent=1 // pred_check
      _
    $region115: #{tpu_custom_call.1} parent=1 // pred_check_branch
      %216 = sbr.rel (0) target = $region117
    $region116: #{tpu_custom_call.1} parent=1 // pred_region
      %218 = dma.done [#allocation15], 16
    $region117: #{tpu_custom_call.1} parent=1 // pred_fallthru
      _
    // Predicated region
    $region118: #{tpu_custom_call.1} parent=1 // pred_check
      _
    $region119: #{tpu_custom_call.1} parent=1 // pred_check_branch
      %220 = sbr.rel (0) target = $region121
    $region120: #{tpu_custom_call.1} parent=1 // pred_region
      %222 = dma.done [#allocation15], 512
    $region121: #{tpu_custom_call.1} parent=1 // pred_fallthru
      _
    // Predicated region
    $region122: #{tpu_custom_call.1} parent=1 // pred_check
      _
    $region123: #{tpu_custom_call.1} parent=1 // pred_check_branch
      %224 = sbr.rel (0) target = $region125
    $region124: #{tpu_custom_call.1} parent=1 // pred_region
      %226 = dma.done [#allocation18], 512
    $region125: #{tpu_custom_call.1} parent=1 // pred_fallthru
      _
    // Predicated region
    $region126: #{tpu_custom_call.1} parent=1 // pred_check
      _
    $region127: #{tpu_custom_call.1} parent=1 // pred_check_branch
      %228 = sbr.rel (0) target = $region129
    $region128: #{tpu_custom_call.1} parent=1 // pred_region
      %230 = dma.done [#allocation18], 512
    $region129: #{tpu_custom_call.1} parent=1 // pred_fallthru
      _
    %v231 = vld [vmem:[#allocation2] sm:$0xff]
    %v232 = vld [vmem:[#allocation2 + $0x8] sm:$0xff]
    %v233 = vld [vmem:[#allocation5] sm:$0x3]
    %v234 = vld [vmem:[%s2] sm:$0xff]
    %v235 = vld [vmem:[%s2 + $0x8] sm:$0xff]
    %vm236 = vcmask 130048
    %v238 = vsel %vm236, %v231, 0
    %v241 = vsel %vm236, %v232, 0
    %243 = vmatpush.msra.mxu0 0.0
    %244 = vmatpush.msra.mxu0 0.0
    %245 = vmatpush.msra.mxu0 0.0
    %246 = vmatpush.msra.mxu0 0.0
    %247 = vmatpush.msra.mxu0 0.0
    %248 = vmatpush.msra.mxu0 0.0
    %249 = vmatpush.msra.mxu0 0.0
    %250 = vmatpush.msra.mxu0 0.0
    %251 = vmatpush.msra.mxu0 0.0
    %252 = vmatpush.msra.mxu0 0.0
    %253 = vmatpush.msra.mxu0 0.0
    %254 = vmatpush.msra.mxu0 0.0
    %255 = vmatpush.msra.mxu0 0.0
    %256 = vmatpush.msra.mxu0 0.0
    %257 = vmatpush.msra.mxu0 %v235
    %258 = vmatpush.msra.mxu0 %v234
    %259 = vmatmul.f32.gmra.mxu0 %v238
    %v260 = vpop.f32.mrf.mxu0
    %v261 = vadd.f32 0.0, %v260
    %262 = vmatmul.f32.gmra.mxu0 %v241
    %v263 = vpop.f32.mrf.mxu0
    %v264 = vadd.f32 0.0, %v263
    %265 = vdwg.mxu0
    %v266 = vld [vmem:[#allocation7] sm:$0xff]
    %v267 = vld [vmem:[#allocation8] sm:$0x1]
    %v269 = vperm.slane %v267, 0
    %vm271 = vcmask 64512
    %v273 = vsel %vm271, %v261, 0
    %v276 = vsel %vm271, %v264, 0
    %278 = vmatpush.msra.mxu0 0.0
    %279 = vmatpush.msra.mxu0 0.0
    %280 = vmatpush.msra.mxu0 0.0
    %281 = vmatpush.msra.mxu0 0.0
    %282 = vmatpush.msra.mxu0 0.0
    %283 = vmatpush.msra.mxu0 0.0
    %284 = vmatpush.msra.mxu0 0.0
    %285 = vmatpush.msra.mxu0 0.0
    %286 = vmatpush.msra.mxu0 0.0
    %287 = vmatpush.msra.mxu0 0.0
    %288 = vmatpush.msra.mxu0 0.0
    %289 = vmatpush.msra.mxu0 0.0
    %290 = vmatpush.msra.mxu0 0.0
    %291 = vmatpush.msra.mxu0 0.0
    %292 = vmatpush.msra.mxu0 0.0
    %293 = vmatpush.msra.mxu0 %v266
    %294 = vmatmul.f32.gmra.mxu0 %v273
    %v295 = vpop.f32.mrf.mxu0
    %v296 = vadd.f32 %v269, %v295
    %297 = vmatmul.f32.gmra.mxu0 %v276
    %v298 = vpop.f32.mrf.mxu0
    %v299 = vadd.f32 %v269, %v298
    %300 = vdwg.mxu0
    %v301 = vmax.f32 %v296, 0.0
    %v302 = vmax.f32 %v299, 0.0
    %v303 = vld [vmem:[#allocation10] sm:$0xff]
    %v304 = vld [vmem:[#allocation10 + $0x8] sm:$0xff]
    %v305 = vld [vmem:[#allocation10 + $0x10] sm:$0xff]
    %v306 = vld [vmem:[#allocation10 + $0x18] sm:$0xff]
    %v307 = vld [vmem:[#allocation11] sm:$0x1]
    %v309 = vperm.slane %v307, 0
    %vm311 = vcmask 261120
    %v313 = vsel %vm311, %v301, 0
    %v316 = vsel %vm311, %v302, 0
    %318 = vmatpush.msra.mxu0 0.0
    %319 = vmatpush.msra.mxu0 0.0
    %320 = vmatpush.msra.mxu0 0.0
    %321 = vmatpush.msra.mxu0 0.0
    %322 = vmatpush.msra.mxu0 0.0
    %323 = vmatpush.msra.mxu0 0.0
    %324 = vmatpush.msra.mxu0 0.0
    %325 = vmatpush.msra.mxu0 0.0
    %326 = vmatpush.msra.mxu0 0.0
    %327 = vmatpush.msra.mxu0 0.0
    %328 = vmatpush.msra.mxu0 0.0
    %329 = vmatpush.msra.mxu0 0.0
    %330 = vmatpush.msra.mxu0 %v306
    %331 = vmatpush.msra.mxu0 %v305
    %332 = vmatpush.msra.mxu0 %v304
    %333 = vmatpush.msra.mxu0 %v303
    %334 = vmatmul.f32.gmra.mxu0 %v313
    %v335 = vpop.f32.mrf.mxu0
    %v336 = vadd.f32 %v309, %v335
    %337 = vmatmul.f32.gmra.mxu0 %v316
    %v338 = vpop.f32.mrf.mxu0
    %v339 = vadd.f32 %v309, %v338
    %340 = vdwg.mxu0
    %v341 = vmax.f32 %v336, 0.0
    %v342 = vmax.f32 %v339, 0.0
    %v343 = vsel %vm311, %v341, 0.0
    %v344 = vsel %vm311, %v342, 0.0
    %v345 = vadd.f32 %v343, %v344
    %v346 = vrot.slane %v345, 4
    %v347 = vadd.f32 %v345, %v346
    %v348 = vrot.slane %v347, 2
    %v349 = vadd.f32 %v347, %v348
    %v350 = vrot.slane %v349, 1
    %v351 = vadd.f32 %v349, %v350
    %v352 = vmul.f32 %v341, %v341
    %v353 = vmul.f32 %v342, %v342
    %v354 = vsel %vm311, %v352, 0.0
    %v355 = vsel %vm311, %v353, 0.0
    %v356 = vadd.f32 %v354, %v355
    %v357 = vrot.slane %v356, 4
    %v358 = vadd.f32 %v356, %v357
    %v359 = vrot.slane %v358, 2
    %v360 = vadd.f32 %v358, %v359
    %v361 = vrot.slane %v360, 1
    %v362 = vadd.f32 %v360, %v361
    %v363 = vmul.f32 %v351, 0.0625
    %v364 = vmul.f32 %v362, 0.0625
    %v365 = vmul.f32 %v363, %v363
    %v366 = vsub.f32 %v364, %v365
    %v367 = vsub.f32 %v341, %v363
    %v368 = vsub.f32 %v342, %v363
    %v369 = vadd.f32 %v366, 1e-05
    %v370 = vrsqrt.pop %v369
    %v371 = vmul.f32 %v370, %v369
    %v372 = vmul.f32 %v371, %v370
    %v373 = vmul.f32 0.5, %v372
    %v374 = vsub.f32 1.5, %v373
    %v375 = vmul.f32 %v370, %v374
    %vm376 = vweird.f32 %v369
    %vm377 = vweird.f32 %v370
    %vm378 = vmor %vm376, %vm377
    %v379 = vsel %vm378, %v370, %v375
    %v380 = vmul.f32 %v367, %v379
    %v381 = vmul.f32 %v368, %v379
    %v382 = vld [vmem:[#allocation13] sm:$0x1]
    %v384 = vperm.slane %v382, 0
    %v386 = vmul.f32 %v380, %v384
    %v387 = vmul.f32 %v381, %v384
    %v388 = vld [vmem:[#allocation14] sm:$0x1]
    %v390 = vperm.slane %v388, 0
    %v392 = vadd.f32 %v386, %v390
    %v393 = vadd.f32 %v387, %v390
    %394 = vst.msk [vmem:[#allocation20] sm:$0xff] %vm311, %v392
    %395 = vst.msk [vmem:[#allocation20 + $0x8] sm:$0xff] %vm311, %v393
    %v397 = vsel %vm236, %v233, 0
    %399 = vmatpush.msra.mxu0 0.0
    %400 = vmatpush.msra.mxu0 0.0
    %401 = vmatpush.msra.mxu0 0.0
    %402 = vmatpush.msra.mxu0 0.0
    %403 = vmatpush.msra.mxu0 0.0
    %404 = vmatpush.msra.mxu0 0.0
    %405 = vmatpush.msra.mxu0 0.0
    %406 = vmatpush.msra.mxu0 0.0
    %407 = vmatpush.msra.mxu0 0.0
    %408 = vmatpush.msra.mxu0 0.0
    %409 = vmatpush.msra.mxu0 0.0
    %410 = vmatpush.msra.mxu0 0.0
    %411 = vmatpush.msra.mxu0 0.0
    %412 = vmatpush.msra.mxu0 0.0
    %413 = vmatpush.msra.mxu0 %v393
    %414 = vmatpush.msra.mxu0 %v392
    %415 = vmatmul.f32.gmra.mxu0 %v397
    %v416 = vpop.f32.mrf.mxu0
    %v417 = vadd.f32 0.0, %v416
    %418 = vdwg.mxu0
    %vm419 = vcmask 254976
    %420 = vst.msk [vmem:[#allocation21] sm:$0x3] %vm419, %v417
    %421 = vmatpush.msra.mxu0 0.0
    %422 = vmatpush.msra.mxu0 0.0
    %423 = vmatpush.msra.mxu0 0.0
    %424 = vmatpush.msra.mxu0 0.0
    %425 = vmatpush.msra.mxu0 0.0
    %426 = vmatpush.msra.mxu0 0.0
    %427 = vmatpush.msra.mxu0 0.0
    %428 = vmatpush.msra.mxu0 0.0
    %429 = vmatpush.msra.mxu0 0.0
    %430 = vmatpush.msra.mxu0 0.0
    %431 = vmatpush.msra.mxu0 0.0
    %432 = vmatpush.msra.mxu0 0.0
    %433 = vmatpush.msra.mxu0 0.0
    %434 = vmatpush.msra.mxu0 0.0
    %435 = vmatpush.msra.mxu0 %v393
    %436 = vmatpush.msra.mxu0 %v392
    %437 = vmatmul.f32.gmra.mxu0 %v238
    %v438 = vpop.f32.mrf.mxu0
    %v439 = vadd.f32 0.0, %v438
    %440 = vmatmul.f32.gmra.mxu0 %v241
    %v441 = vpop.f32.mrf.mxu0
    %v442 = vadd.f32 0.0, %v441
    %443 = vdwg.mxu0
    %v444 = vld [vmem:[%s9] sm:$0xff]
    %v445 = vld [vmem:[%s9 + $0x8] sm:$0xff]
    %v446 = vld [vmem:[%s9 + $0x10] sm:$0xff]
    %v447 = vld [vmem:[%s9 + $0x18] sm:$0xff]
    %v448 = vld [vmem:[%s10] sm:$0x1]
    %v450 = vperm.slane %v448, 0
    %v453 = vsel %vm311, %v439, 0
    %v456 = vsel %vm311, %v442, 0
    %458 = vmatpush.msra.mxu0 0.0
    %459 = vmatpush.msra.mxu0 0.0
    %460 = vmatpush.msra.mxu0 0.0
    %461 = vmatpush.msra.mxu0 0.0
    %462 = vmatpush.msra.mxu0 0.0
    %463 = vmatpush.msra.mxu0 0.0
    %464 = vmatpush.msra.mxu0 0.0
    %465 = vmatpush.msra.mxu0 0.0
    %466 = vmatpush.msra.mxu0 0.0
    %467 = vmatpush.msra.mxu0 0.0
    %468 = vmatpush.msra.mxu0 0.0
    %469 = vmatpush.msra.mxu0 0.0
    %470 = vmatpush.msra.mxu0 %v447
    %471 = vmatpush.msra.mxu0 %v446
    %472 = vmatpush.msra.mxu0 %v445
    %473 = vmatpush.msra.mxu0 %v444
    %474 = vmatmul.f32.gmra.mxu0 %v453
    %v475 = vpop.f32.mrf.mxu0
    %v476 = vadd.f32 %v450, %v475
    %477 = vmatmul.f32.gmra.mxu0 %v456
    %v478 = vpop.f32.mrf.mxu0
    %v479 = vadd.f32 %v450, %v478
    %480 = vdwg.mxu0
    %v481 = vmax.f32 %v476, 0.0
    %v482 = vmax.f32 %v479, 0.0
    %v483 = vld [vmem:[#allocation16] sm:$0xff]
    %v484 = vld [vmem:[#allocation16 + $0x8] sm:$0xff]
    %v485 = vld [vmem:[#allocation16 + $0x10] sm:$0xff]
    %v486 = vld [vmem:[#allocation16 + $0x18] sm:$0xff]
    %v487 = vld [vmem:[%s12] sm:$0x1]
    %v489 = vperm.slane %v487, 0
    %v492 = vsel %vm311, %v481, 0
    %v495 = vsel %vm311, %v482, 0
    %497 = vmatpush.msra.mxu0 0.0
    %498 = vmatpush.msra.mxu0 0.0
    %499 = vmatpush.msra.mxu0 0.0
    %500 = vmatpush.msra.mxu0 0.0
    %501 = vmatpush.msra.mxu0 0.0
    %502 = vmatpush.msra.mxu0 0.0
    %503 = vmatpush.msra.mxu0 0.0
    %504 = vmatpush.msra.mxu0 0.0
    %505 = vmatpush.msra.mxu0 0.0
    %506 = vmatpush.msra.mxu0 0.0
    %507 = vmatpush.msra.mxu0 0.0
    %508 = vmatpush.msra.mxu0 0.0
    %509 = vmatpush.msra.mxu0 %v486
    %510 = vmatpush.msra.mxu0 %v485
    %511 = vmatpush.msra.mxu0 %v484
    %512 = vmatpush.msra.mxu0 %v483
    %513 = vmatmul.f32.gmra.mxu0 %v492
    %v514 = vpop.f32.mrf.mxu0
    %v515 = vadd.f32 %v489, %v514
    %516 = vmatmul.f32.gmra.mxu0 %v495
    %v517 = vpop.f32.mrf.mxu0
    %v518 = vadd.f32 %v489, %v517
    %519 = vdwg.mxu0
    %v520 = vmax.f32 %v515, 0.0
    %v521 = vmax.f32 %v518, 0.0
    %v522 = vsel %vm311, %v520, 0.0
    %v523 = vsel %vm311, %v521, 0.0
    %v524 = vadd.f32 %v522, %v523
    %v525 = vrot.slane %v524, 4
    %v526 = vadd.f32 %v524, %v525
    %v527 = vrot.slane %v526, 2
    %v528 = vadd.f32 %v526, %v527
    %v529 = vrot.slane %v528, 1
    %v530 = vadd.f32 %v528, %v529
    %v531 = vmul.f32 %v520, %v520
    %v532 = vmul.f32 %v521, %v521
    %v533 = vsel %vm311, %v531, 0.0
    %v534 = vsel %vm311, %v532, 0.0
    %v535 = vadd.f32 %v533, %v534
    %v536 = vrot.slane %v535, 4
    %v537 = vadd.f32 %v535, %v536
    %v538 = vrot.slane %v537, 2
    %v539 = vadd.f32 %v537, %v538
    %v540 = vrot.slane %v539, 1
    %v541 = vadd.f32 %v539, %v540
    %v542 = vmul.f32 %v530, 0.0625
    %v543 = vmul.f32 %v541, 0.0625
    %v544 = vmul.f32 %v542, %v542
    %v545 = vsub.f32 %v543, %v544
    %v546 = vsub.f32 %v520, %v542
    %v547 = vsub.f32 %v521, %v542
    %v548 = vadd.f32 %v545, 1e-05
    %v549 = vrsqrt.pop %v548
    %v550 = vmul.f32 %v549, %v548
    %v551 = vmul.f32 %v550, %v549
    %v552 = vmul.f32 0.5, %v551
    %v553 = vsub.f32 1.5, %v552
    %v554 = vmul.f32 %v549, %v553
    %vm555 = vweird.f32 %v548
    %vm556 = vweird.f32 %v549
    %vm557 = vmor %vm555, %vm556
    %v558 = vsel %vm557, %v549, %v554
    %v559 = vmul.f32 %v546, %v558
    %v560 = vmul.f32 %v547, %v558
    %v561 = vld [vmem:[%s13] sm:$0x1]
    %v563 = vperm.slane %v561, 0
    %v565 = vmul.f32 %v559, %v563
    %v566 = vmul.f32 %v560, %v563
    %v567 = vld [vmem:[%s14] sm:$0x1]
    %v569 = vperm.slane %v567, 0
    %v571 = vadd.f32 %v565, %v569
    %v572 = vadd.f32 %v566, %v569
    %575 = vrot.lane.b32.xlu0 %v571, 32
    %v576 = vpop.permute.xlu0 %575
    %577 = vrot.lane.b32.xlu0 %v572, 32
    %v578 = vpop.permute.xlu0 %577
    %vm581 = vcmask 523520
    %582 = vst.msk [vmem:[#allocation20] sm:$0xff] %vm581, %v576
    %583 = vst.msk [vmem:[#allocation20 + $0x8] sm:$0xff] %vm581, %v578
    %584 = vmatpush.msra.mxu0 0.0
    %585 = vmatpush.msra.mxu0 0.0
    %586 = vmatpush.msra.mxu0 0.0
    %587 = vmatpush.msra.mxu0 0.0
    %588 = vmatpush.msra.mxu0 0.0
    %589 = vmatpush.msra.mxu0 0.0
    %590 = vmatpush.msra.mxu0 0.0
    %591 = vmatpush.msra.mxu0 0.0
    %592 = vmatpush.msra.mxu0 0.0
    %593 = vmatpush.msra.mxu0 0.0
    %594 = vmatpush.msra.mxu0 0.0
    %595 = vmatpush.msra.mxu0 0.0
    %596 = vmatpush.msra.mxu0 0.0
    %597 = vmatpush.msra.mxu0 0.0
    %598 = vmatpush.msra.mxu0 %v572
    %599 = vmatpush.msra.mxu0 %v571
    %600 = vmatmul.f32.gmra.mxu0 %v397
    %v601 = vpop.f32.mrf.mxu0
    %v602 = vadd.f32 0.0, %v601
    %603 = vdwg.mxu0
    %605 = vrot.lane.b32.xlu0 %v602, 32
    %v606 = vpop.permute.xlu0 %605
    %vm608 = vcmask 517376
    %609 = vst.msk [vmem:[#allocation21] sm:$0x3] %vm608, %v606
    %610 = vmatpush.msra.mxu0 0.0
    %611 = vmatpush.msra.mxu0 0.0
    %612 = vmatpush.msra.mxu0 0.0
    %613 = vmatpush.msra.mxu0 0.0
    %614 = vmatpush.msra.mxu0 0.0
    %615 = vmatpush.msra.mxu0 0.0
    %616 = vmatpush.msra.mxu0 0.0
    %617 = vmatpush.msra.mxu0 0.0
    %618 = vmatpush.msra.mxu0 0.0
    %619 = vmatpush.msra.mxu0 0.0
    %620 = vmatpush.msra.mxu0 0.0
    %621 = vmatpush.msra.mxu0 0.0
    %622 = vmatpush.msra.mxu0 0.0
    %623 = vmatpush.msra.mxu0 0.0
    %624 = vmatpush.msra.mxu0 %v572
    %625 = vmatpush.msra.mxu0 %v571
    %626 = vmatmul.f32.gmra.mxu0 %v238
    %v627 = vpop.f32.mrf.mxu0
    %v628 = vadd.f32 0.0, %v627
    %629 = vmatmul.f32.gmra.mxu0 %v241
    %v630 = vpop.f32.mrf.mxu0
    %v631 = vadd.f32 0.0, %v630
    %632 = vdwg.mxu0
    %v633 = vld [vmem:[#allocation17] sm:$0xff]
    %v634 = vld [vmem:[#allocation17 + $0x8] sm:$0xff]
    %v635 = vld [vmem:[#allocation17 + $0x10] sm:$0xff]
    %v636 = vld [vmem:[#allocation17 + $0x18] sm:$0xff]
    %v637 = vld [vmem:[%s16] sm:$0x1]
    %v639 = vperm.slane %v637, 0
    %v642 = vsel %vm311, %v628, 0
    %v645 = vsel %vm311, %v631, 0
    %647 = vmatpush.msra.mxu0 0.0
    %648 = vmatpush.msra.mxu0 0.0
    %649 = vmatpush.msra.mxu0 0.0
    %650 = vmatpush.msra.mxu0 0.0
    %651 = vmatpush.msra.mxu0 0.0
    %652 = vmatpush.msra.mxu0 0.0
    %653 = vmatpush.msra.mxu0 0.0
    %654 = vmatpush.msra.mxu0 0.0
    %655 = vmatpush.msra.mxu0 0.0
    %656 = vmatpush.msra.mxu0 0.0
    %657 = vmatpush.msra.mxu0 0.0
    %658 = vmatpush.msra.mxu0 0.0
    %659 = vmatpush.msra.mxu0 %v636
    %660 = vmatpush.msra.mxu0 %v635
    %661 = vmatpush.msra.mxu0 %v634
    %662 = vmatpush.msra.mxu0 %v633
    %663 = vmatmul.f32.gmra.mxu0 %v642
    %v664 = vpop.f32.mrf.mxu0
    %v665 = vadd.f32 %v639, %v664
    %666 = vmatmul.f32.gmra.mxu0 %v645
    %v667 = vpop.f32.mrf.mxu0
    %v668 = vadd.f32 %v639, %v667
    %669 = vdwg.mxu0
    %v670 = vmax.f32 %v665, 0.0
    %v671 = vmax.f32 %v668, 0.0
    %v672 = vld [vmem:[#allocation19] sm:$0xff]
    %v673 = vld [vmem:[#allocation19 + $0x8] sm:$0xff]
    %v674 = vld [vmem:[#allocation19 + $0x10] sm:$0xff]
    %v675 = vld [vmem:[#allocation19 + $0x18] sm:$0xff]
    %v676 = vld [vmem:[%s18] sm:$0x1]
    %v678 = vperm.slane %v676, 0
    %v681 = vsel %vm311, %v670, 0
    %v684 = vsel %vm311, %v671, 0
    %686 = vmatpush.msra.mxu0 0.0
    %687 = vmatpush.msra.mxu0 0.0
    %688 = vmatpush.msra.mxu0 0.0
    %689 = vmatpush.msra.mxu0 0.0
    %690 = vmatpush.msra.mxu0 0.0
    %691 = vmatpush.msra.mxu0 0.0
    %692 = vmatpush.msra.mxu0 0.0
    %693 = vmatpush.msra.mxu0 0.0
    %694 = vmatpush.msra.mxu0 0.0
    %695 = vmatpush.msra.mxu0 0.0
    %696 = vmatpush.msra.mxu0 0.0
    %697 = vmatpush.msra.mxu0 0.0
    %698 = vmatpush.msra.mxu0 %v675
    %699 = vmatpush.msra.mxu0 %v674
    %700 = vmatpush.msra.mxu0 %v673
    %701 = vmatpush.msra.mxu0 %v672
    %702 = vmatmul.f32.gmra.mxu0 %v681
    %v703 = vpop.f32.mrf.mxu0
    %v704 = vadd.f32 %v678, %v703
    %705 = vmatmul.f32.gmra.mxu0 %v684
    %v706 = vpop.f32.mrf.mxu0
    %v707 = vadd.f32 %v678, %v706
    %708 = vdwg.mxu0
    %v709 = vmax.f32 %v704, 0.0
    %v710 = vmax.f32 %v707, 0.0
    %v711 = vsel %vm311, %v709, 0.0
    %v712 = vsel %vm311, %v710, 0.0
    %v713 = vadd.f32 %v711, %v712
    %v714 = vrot.slane %v713, 4
    %v715 = vadd.f32 %v713, %v714
    %v716 = vrot.slane %v715, 2
    %v717 = vadd.f32 %v715, %v716
    %v718 = vrot.slane %v717, 1
    %v719 = vadd.f32 %v717, %v718
    %v720 = vmul.f32 %v709, %v709
    %v721 = vmul.f32 %v710, %v710
    %v722 = vsel %vm311, %v720, 0.0
    %v723 = vsel %vm311, %v721, 0.0
    %v724 = vadd.f32 %v722, %v723
    %v725 = vrot.slane %v724, 4
    %v726 = vadd.f32 %v724, %v725
    %v727 = vrot.slane %v726, 2
    %v728 = vadd.f32 %v726, %v727
    %v729 = vrot.slane %v728, 1
    %v730 = vadd.f32 %v728, %v729
    %v731 = vmul.f32 %v719, 0.0625
    %v732 = vmul.f32 %v730, 0.0625
    %v733 = vmul.f32 %v731, %v731
    %v734 = vsub.f32 %v732, %v733
    %v735 = vsub.f32 %v709, %v731
    %v736 = vsub.f32 %v710, %v731
    %v737 = vadd.f32 %v734, 1e-05
    %v738 = vrsqrt.pop %v737
    %v739 = vmul.f32 %v738, %v737
    %v740 = vmul.f32 %v739, %v738
    %v741 = vmul.f32 0.5, %v740
    %v742 = vsub.f32 1.5, %v741
    %v743 = vmul.f32 %v738, %v742
    %vm744 = vweird.f32 %v737
    %vm745 = vweird.f32 %v738
    %vm746 = vmor %vm744, %vm745
    %v747 = vsel %vm746, %v738, %v743
    %v748 = vmul.f32 %v735, %v747
    %v749 = vmul.f32 %v736, %v747
    %v750 = vld [vmem:[%s19] sm:$0x1]
    %v752 = vperm.slane %v750, 0
    %v754 = vmul.f32 %v748, %v752
    %v755 = vmul.f32 %v749, %v752
    %v756 = vld [vmem:[%s20] sm:$0x1]
    %v758 = vperm.slane %v756, 0
    %v760 = vadd.f32 %v754, %v758
    %v761 = vadd.f32 %v755, %v758
    %764 = vrot.lane.b32.xlu0 %v760, 64
    %v765 = vpop.permute.xlu0 %764
    %766 = vrot.lane.b32.xlu0 %v761, 64
    %v767 = vpop.permute.xlu0 %766
    %vm770 = vcmask 785920
    %771 = vst.msk [vmem:[#allocation20] sm:$0xff] %vm770, %v765
    %772 = vst.msk [vmem:[#allocation20 + $0x8] sm:$0xff] %vm770, %v767
    %773 = vmatpush.msra.mxu0 0.0
    %774 = vmatpush.msra.mxu0 0.0
    %775 = vmatpush.msra.mxu0 0.0
    %776 = vmatpush.msra.mxu0 0.0
    %777 = vmatpush.msra.mxu0 0.0
    %778 = vmatpush.msra.mxu0 0.0
    %779 = vmatpush.msra.mxu0 0.0
    %780 = vmatpush.msra.mxu0 0.0
    %781 = vmatpush.msra.mxu0 0.0
    %782 = vmatpush.msra.mxu0 0.0
    %783 = vmatpush.msra.mxu0 0.0
    %784 = vmatpush.msra.mxu0 0.0
    %785 = vmatpush.msra.mxu0 0.0
    %786 = vmatpush.msra.mxu0 0.0
    %787 = vmatpush.msra.mxu0 %v761
    %788 = vmatpush.msra.mxu0 %v760
    %789 = vmatmul.f32.gmra.mxu0 %v397
    %v790 = vpop.f32.mrf.mxu0
    %v791 = vadd.f32 0.0, %v790
    %792 = vdwg.mxu0
    %794 = vrot.lane.b32.xlu0 %v791, 64
    %v795 = vpop.permute.xlu0 %794
    %vm797 = vcmask 779776
    %798 = vst.msk [vmem:[#allocation21] sm:$0x3] %vm797, %v795
    // Predicated region
    $region130: #{tpu_custom_call.1} parent=1 // pred_check
      _
    $region131: #{tpu_custom_call.1} parent=1 // pred_check_branch
      %800 = sbr.rel (0) target = $region133
    $region132: #{tpu_custom_call.1} parent=1 // pred_region
      %802 = vsyncadd [#allocation4], 0
      %s803 = sshll.u32 [#allocation20], 4
      %s804 = int_to_ptr.vmem [resolvable:$true] %s803
      %s805 = sshll.u32 %s21, 4
      %s806 = int_to_ptr.hbm [resolvable:$true] %s805
      %811 = dma.vmem_to_hbm [thread:$0]  %s804, 256, %s806, [#allocation4], 128, 128, 8
    $region133: #{tpu_custom_call.1} parent=1 // pred_fallthru
      _
    // Predicated region
    $region134: #{tpu_custom_call.1} parent=1 // pred_check
      _
    $region135: #{tpu_custom_call.1} parent=1 // pred_check_branch
      %813 = sbr.rel (0) target = $region137
    $region136: #{tpu_custom_call.1} parent=1 // pred_region
      %815 = vsyncadd [#allocation22], 0
      %s817 = sshll.u32 [#allocation21], 4
      %s818 = int_to_ptr.vmem [resolvable:$true] %s817
      %s819 = sshll.u32 %s22, 4
      %s820 = int_to_ptr.hbm [resolvable:$true] %s819
      %822 = dma.vmem_to_hbm [thread:$0]  %s818, 32, %s820, [#allocation22]
    $region137: #{tpu_custom_call.1} parent=1 // pred_fallthru
      _
    // Predicated region
    $region138: #{tpu_custom_call.1} parent=1 // pred_check
      _
    $region139: #{tpu_custom_call.1} parent=1 // pred_check_branch
      %824 = sbr.rel (0) target = $region141
    $region140: #{tpu_custom_call.1} parent=1 // pred_region
      %826 = dma.done [#allocation4], 256
    $region141: #{tpu_custom_call.1} parent=1 // pred_fallthru
      _
    // Predicated region
    $region142: #{tpu_custom_call.1} parent=1 // pred_check
      _
    $region143: #{tpu_custom_call.1} parent=1 // pred_check_branch
      %828 = sbr.rel (0) target = $region145
    $region144: #{tpu_custom_call.1} parent=1 // pred_region
      %830 = dma.done [#allocation22], 32
    $region145: #{tpu_custom_call.1} parent=1 // pred_fallthru
      _
    %831 = vsyncpa [#allocation3], 1
    %832 = vsyncpa [#allocation6], 1
    %833 = vsyncpa [#allocation9], 1
    %834 = vsyncpa [#allocation12], 1
    %835 = vsyncpa [#allocation15], 1
    %836 = vsyncpa [#allocation18], 1
    %837 = vsyncpa [#allocation4], 1
    %838 = vsyncpa [#allocation22], 1

</llo_original>
